<compile_context>
chip_gen: v7x
topology: tpu7x:2x2x1
jax: 0.10.0
libtpu: 0.0.40
codegen_flags: <defaults>
</compile_context>

<pallas_src>
import numpy as np

import jax
import jax.numpy as jnp
from jax import lax
from jax.experimental import pallas as pl
from jax.experimental.pallas import tpu as pltpu


def _round_up(x, m):
    return (x + m - 1) // m * m


def _band_matrices(w, W, C, LP):
    """Fold 3x3xCxC HWIO weights + the column zero-padding into three banded
    (LP, LP) lane-space matrices so each conv row is sum_dy P[r+dy] @ M[dy]."""
    WC = W * C
    lane = np.arange(LP)
    x_of = lane // C                      # spatial column of each lane
    c_of = lane % C                       # channel of each lane
    # rows of M = input lane, cols of M = output lane
    dx = x_of[:, None] - x_of[None, :] + 1                     # kernel dx tap
    valid = ((dx >= 0) & (dx <= 2)
             & (lane[:, None] < WC) & (lane[None, :] < WC))
    dxc = np.clip(dx, 0, 2)
    ci = np.broadcast_to(c_of[:, None], (LP, LP))
    co = np.broadcast_to(c_of[None, :], (LP, LP))
    band = w[:, dxc, ci, co]                                   # (3, LP, LP)
    return jnp.where(valid[None], band, 0.0).astype(jnp.float32)


def _bias_lanes(b, W, C, LP):
    """Bias expanded to lane space, zeroed on the lane-padding region."""
    WC = W * C
    lane = np.arange(LP)
    vec = jnp.where(lane < WC, b[lane % C], 0.0)
    return vec.astype(jnp.float32).reshape(1, LP)


def _fused_rcu_kernel(x_ref, m1_ref, m2_ref, b1_ref, b2_ref, out_ref, p_ref):
    """Fused relu->conv1->relu->conv2->(+x) for one image (lane-dense)."""
    Hp2, LP = p_ref.shape
    H = Hp2 - 2
    x = x_ref[0]                                    # (H, LP) un-ReLU'd residual

    zrow = jnp.zeros((1, LP), jnp.float32)
    p_ref[0:1, :] = zrow                            # top halo row (zero pad)
    p_ref[Hp2 - 1:Hp2, :] = zrow                    # bottom halo row

    def conv3x3(m_ref):
        acc = jnp.zeros((H, LP), jnp.float32)
        for dy in range(3):                         # static unroll: 3 MXU matmuls
            acc = acc + jnp.dot(p_ref[dy:dy + H, :], m_ref[dy],
                                preferred_element_type=jnp.float32)
        return acc

    # conv1(relu(x)) + b1   (padding rows/lanes are zero; relu(0) == 0)
    p_ref[1:H + 1, :] = jnp.maximum(x, 0.0)
    mid = conv3x3(m1_ref) + b1_ref[...]

    # conv2(relu(mid)) + b2 + x   -- `mid` never leaves VMEM
    p_ref[1:H + 1, :] = jnp.maximum(mid, 0.0)
    out_ref[0] = (conv3x3(m2_ref) + b2_ref[...] + x).astype(out_ref.dtype)


@jax.jit
def residual_conv_unit(x, w1, b1, w2, b2):
    """x: (N, H, W, C) f32 NHWC; weights HWIO (3, 3, C, C); biases (C,)."""
    N, H, W, C = x.shape
    WC = W * C
    LP = _round_up(WC, 128)

    # Lane-dense presentation (layout plumbing only). When W*C is already a
    # multiple of 128 this is a pure reshape with no padding.
    x2 = x.reshape(N, H, WC)
    if LP != WC:
        x2 = jnp.pad(x2, ((0, 0), (0, 0), (0, LP - WC)))

    m1 = _band_matrices(w1, W, C, LP)
    m2 = _band_matrices(w2, W, C, LP)
    b1v = _bias_lanes(b1, W, C, LP)
    b2v = _bias_lanes(b2, W, C, LP)

    flops = N * 2 * 3 * 2 * H * LP * LP             # 6 (H,LP)x(LP,LP) matmuls/image
    bytes_accessed = (2 * N * H * LP + 2 * 3 * LP * LP + 2 * LP) * 4

    out2 = pl.pallas_call(
        _fused_rcu_kernel,
        out_shape=jax.ShapeDtypeStruct((N, H, LP), jnp.float32),
        grid_spec=pltpu.PrefetchScalarGridSpec(
            num_scalar_prefetch=0,
            grid=(N,),
            in_specs=[
                pl.BlockSpec((1, H, LP), lambda n: (n, 0, 0)),    # x (lane-dense)
                pl.BlockSpec((3, LP, LP), lambda n: (0, 0, 0)),   # band mats conv1
                pl.BlockSpec((3, LP, LP), lambda n: (0, 0, 0)),   # band mats conv2
                pl.BlockSpec((1, LP), lambda n: (0, 0)),          # bias1 lanes
                pl.BlockSpec((1, LP), lambda n: (0, 0)),          # bias2 lanes
            ],
            out_specs=pl.BlockSpec((1, H, LP), lambda n: (n, 0, 0)),
            scratch_shapes=[pltpu.VMEM((H + 2, LP), jnp.float32)],
        ),
        compiler_params=pltpu.CompilerParams(
            dimension_semantics=("parallel",)),     # batch feeds both v7x TCs
        cost_estimate=pl.CostEstimate(flops=flops, transcendentals=0,
                                      bytes_accessed=bytes_accessed),
    )(x2, m1, m2, b1v, b2v)

    return out2[:, :, :WC].reshape(N, H, W, C)


def _reference(x, w1, b1, w2, b2):
    """Pure-JAX reference matching the PyTorch forward (NHWC/HWIO)."""
    dn = ("NHWC", "HWIO", "NHWC")
    out = jnp.maximum(x, 0.0)
    out = lax.conv_general_dilated(out, w1, (1, 1), "SAME",
                                   dimension_numbers=dn) + b1
    out = jnp.maximum(out, 0.0)
    out = lax.conv_general_dilated(out, w2, (1, 1), "SAME",
                                   dimension_numbers=dn) + b2
    return out + x


if __name__ == "__main__":
    key = jax.random.PRNGKey(0)
    k_x, k_w1, k_b1, k_w2, k_b2 = jax.random.split(key, 5)

    N, H, W, C = 2, 16, 16, 4   # features = 4  (NCHW equivalent: (2, 4, 16, 16))

    x = jax.random.normal(k_x, (N, H, W, C), dtype=jnp.float32)
    w1 = jax.random.normal(k_w1, (3, 3, C, C), dtype=jnp.float32) * 0.1
    b1 = jax.random.normal(k_b1, (C,), dtype=jnp.float32) * 0.1
    w2 = jax.random.normal(k_w2, (3, 3, C, C), dtype=jnp.float32) * 0.1
    b2 = jax.random.normal(k_b2, (C,), dtype=jnp.float32) * 0.1

    out = jax.block_until_ready(residual_conv_unit(x, w1, b1, w2, b2))

    ref = _reference(x, w1, b1, w2, b2)
    assert out.shape == (N, H, W, C)
    assert jnp.allclose(out, ref, atol=1e-4, rtol=1e-4), "mismatch vs reference"

    print("KERNEL_OK")
</pallas_src>

<mosaic_0001>
module attributes {stable_mosaic.version = 11 : i64} {
  func.func @_fused_rcu_kernel(%arg0: i32, %arg1: memref<1x16x128xf32, #tpu.memory_space<vmem>>, %arg2: memref<3x128x128xf32, #tpu.memory_space<vmem>>, %arg3: memref<3x128x128xf32, #tpu.memory_space<vmem>>, %arg4: memref<1x128xf32, #tpu.memory_space<vmem>>, %arg5: memref<1x128xf32, #tpu.memory_space<vmem>>, %arg6: memref<1x16x128xf32, #tpu.memory_space<vmem>>, %arg7: memref<18x128xf32, #tpu.memory_space<vmem>>) attributes {dimension_semantics = [#tpu.dimension_semantics<parallel>], iteration_bounds = array<i64: 2>, scalar_prefetch = 0 : i64, scratch_operands = 1 : i64, tpu.core_type = #tpu.core_type<tc>, window_params = [{transform_indices = @transform_0, window_bounds = array<i64: 1, 16, 128>}, {pipeline_mode = #tpu.pipeline_mode<synchronous>, transform_indices = @transform_1, window_bounds = array<i64: 3, 128, 128>}, {pipeline_mode = #tpu.pipeline_mode<synchronous>, transform_indices = @transform_2, window_bounds = array<i64: 3, 128, 128>}, {pipeline_mode = #tpu.pipeline_mode<synchronous>, transform_indices = @transform_3, window_bounds = array<i64: 1, 128>}, {pipeline_mode = #tpu.pipeline_mode<synchronous>, transform_indices = @transform_4, window_bounds = array<i64: 1, 128>}, {transform_indices = @transform_5, window_bounds = array<i64: 1, 16, 128>}]} {
    %c0 = arith.constant 0 : index
    %c0_0 = arith.constant 0 : index
    %c0_1 = arith.constant 0 : index
    %0 = vector.load %arg1[%c0, %c0_0, %c0_1] : memref<1x16x128xf32, #tpu.memory_space<vmem>>, vector<1x16x128xf32>
    %1 = vector.shape_cast %0 : vector<1x16x128xf32> to vector<16x128xf32>
    %cst = arith.constant 0.000000e+00 : f32
    %2 = vector.broadcast %cst : f32 to vector<1x128xf32>
    %c0_2 = arith.constant 0 : index
    %c0_3 = arith.constant 0 : index
    %3 = vector.load %arg7[%c0_2, %c0_3] : memref<18x128xf32, #tpu.memory_space<vmem>>, vector<1x128xf32>
    tpu.vector_store %arg7[%c0_2, %c0_3], %2 {strides = array<i32>} : memref<18x128xf32, #tpu.memory_space<vmem>>, vector<1x128xf32>,
    %c17 = arith.constant 17 : index
    %c0_4 = arith.constant 0 : index
    %4 = vector.load %arg7[%c17, %c0_4] : memref<18x128xf32, #tpu.memory_space<vmem>>, vector<1x128xf32>
    tpu.vector_store %arg7[%c17, %c0_4], %2 {strides = array<i32>} : memref<18x128xf32, #tpu.memory_space<vmem>>, vector<1x128xf32>,
    %cst_5 = arith.constant 0.000000e+00 : f32
    %5 = vector.broadcast %cst_5 : f32 to vector<16x128xf32>
    %6 = arith.maximumf %1, %5 : vector<16x128xf32>
    %c1 = arith.constant 1 : index
    %c0_6 = arith.constant 0 : index
    %7 = vector.load %arg7[%c1, %c0_6] : memref<18x128xf32, #tpu.memory_space<vmem>>, vector<16x128xf32>
    tpu.vector_store %arg7[%c1, %c0_6], %6 {strides = array<i32>} : memref<18x128xf32, #tpu.memory_space<vmem>>, vector<16x128xf32>,
    %cst_7 = arith.constant 0.000000e+00 : f32
    %8 = vector.broadcast %cst_7 : f32 to vector<16x128xf32>
    %c0_8 = arith.constant 0 : index
    %c0_9 = arith.constant 0 : index
    %9 = vector.load %arg7[%c0_8, %c0_9] : memref<18x128xf32, #tpu.memory_space<vmem>>, vector<16x128xf32>
    %c0_10 = arith.constant 0 : index
    %c0_11 = arith.constant 0 : index
    %c0_12 = arith.constant 0 : index
    %10 = vector.load %arg2[%c0_10, %c0_11, %c0_12] : memref<3x128x128xf32, #tpu.memory_space<vmem>>, vector<1x128x128xf32>
    %11 = vector.shape_cast %10 : vector<1x128x128xf32> to vector<128x128xf32>
    %cst_13 = arith.constant dense<0.000000e+00> : vector<16x128xf32>
    %12 = tpu.matmul %9, %11, %cst_13 {dimension_numbers = #tpu.dot_dimension_numbers<[1], [0], [0], [1], [0, 0, 1, 1], [], []>} : vector<16x128xf32>, vector<128x128xf32>, vector<16x128xf32> -> vector<16x128xf32>
    %13 = arith.addf %8, %12 : vector<16x128xf32>
    %c1_14 = arith.constant 1 : index
    %c0_15 = arith.constant 0 : index
    %14 = vector.load %arg7[%c1_14, %c0_15] : memref<18x128xf32, #tpu.memory_space<vmem>>, vector<16x128xf32>
    %c1_16 = arith.constant 1 : index
    %c0_17 = arith.constant 0 : index
    %c0_18 = arith.constant 0 : index
    %15 = vector.load %arg2[%c1_16, %c0_17, %c0_18] : memref<3x128x128xf32, #tpu.memory_space<vmem>>, vector<1x128x128xf32>
    %16 = vector.shape_cast %15 : vector<1x128x128xf32> to vector<128x128xf32>
    %cst_19 = arith.constant dense<0.000000e+00> : vector<16x128xf32>
    %17 = tpu.matmul %14, %16, %cst_19 {dimension_numbers = #tpu.dot_dimension_numbers<[1], [0], [0], [1], [0, 0, 1, 1], [], []>} : vector<16x128xf32>, vector<128x128xf32>, vector<16x128xf32> -> vector<16x128xf32>
    %18 = arith.addf %13, %17 : vector<16x128xf32>
    %c2 = arith.constant 2 : index
    %c0_20 = arith.constant 0 : index
    %19 = vector.load %arg7[%c2, %c0_20] : memref<18x128xf32, #tpu.memory_space<vmem>>, vector<16x128xf32>
    %c2_21 = arith.constant 2 : index
    %c0_22 = arith.constant 0 : index
    %c0_23 = arith.constant 0 : index
    %20 = vector.load %arg2[%c2_21, %c0_22, %c0_23] : memref<3x128x128xf32, #tpu.memory_space<vmem>>, vector<1x128x128xf32>
    %21 = vector.shape_cast %20 : vector<1x128x128xf32> to vector<128x128xf32>
    %cst_24 = arith.constant dense<0.000000e+00> : vector<16x128xf32>
    %22 = tpu.matmul %19, %21, %cst_24 {dimension_numbers = #tpu.dot_dimension_numbers<[1], [0], [0], [1], [0, 0, 1, 1], [], []>} : vector<16x128xf32>, vector<128x128xf32>, vector<16x128xf32> -> vector<16x128xf32>
    %23 = arith.addf %18, %22 : vector<16x128xf32>
    %c0_25 = arith.constant 0 : index
    %c0_26 = arith.constant 0 : index
    %24 = vector.load %arg4[%c0_25, %c0_26] : memref<1x128xf32, #tpu.memory_space<vmem>>, vector<1x128xf32>
    %25 = vector.broadcast %24 : vector<1x128xf32> to vector<16x128xf32>
    %26 = arith.addf %23, %25 : vector<16x128xf32>
    %cst_27 = arith.constant 0.000000e+00 : f32
    %27 = vector.broadcast %cst_27 : f32 to vector<16x128xf32>
    %28 = arith.maximumf %26, %27 : vector<16x128xf32>
    %c1_28 = arith.constant 1 : index
    %c0_29 = arith.constant 0 : index
    %29 = vector.load %arg7[%c1_28, %c0_29] : memref<18x128xf32, #tpu.memory_space<vmem>>, vector<16x128xf32>
    tpu.vector_store %arg7[%c1_28, %c0_29], %28 {strides = array<i32>} : memref<18x128xf32, #tpu.memory_space<vmem>>, vector<16x128xf32>,
    %cst_30 = arith.constant 0.000000e+00 : f32
    %30 = vector.broadcast %cst_30 : f32 to vector<16x128xf32>
    %c0_31 = arith.constant 0 : index
    %c0_32 = arith.constant 0 : index
    %31 = vector.load %arg7[%c0_31, %c0_32] : memref<18x128xf32, #tpu.memory_space<vmem>>, vector<16x128xf32>
    %c0_33 = arith.constant 0 : index
    %c0_34 = arith.constant 0 : index
    %c0_35 = arith.constant 0 : index
    %32 = vector.load %arg3[%c0_33, %c0_34, %c0_35] : memref<3x128x128xf32, #tpu.memory_space<vmem>>, vector<1x128x128xf32>
    %33 = vector.shape_cast %32 : vector<1x128x128xf32> to vector<128x128xf32>
    %cst_36 = arith.constant dense<0.000000e+00> : vector<16x128xf32>
    %34 = tpu.matmul %31, %33, %cst_36 {dimension_numbers = #tpu.dot_dimension_numbers<[1], [0], [0], [1], [0, 0, 1, 1], [], []>} : vector<16x128xf32>, vector<128x128xf32>, vector<16x128xf32> -> vector<16x128xf32>
    %35 = arith.addf %30, %34 : vector<16x128xf32>
    %c1_37 = arith.constant 1 : index
    %c0_38 = arith.constant 0 : index
    %36 = vector.load %arg7[%c1_37, %c0_38] : memref<18x128xf32, #tpu.memory_space<vmem>>, vector<16x128xf32>
    %c1_39 = arith.constant 1 : index
    %c0_40 = arith.constant 0 : index
    %c0_41 = arith.constant 0 : index
    %37 = vector.load %arg3[%c1_39, %c0_40, %c0_41] : memref<3x128x128xf32, #tpu.memory_space<vmem>>, vector<1x128x128xf32>
    %38 = vector.shape_cast %37 : vector<1x128x128xf32> to vector<128x128xf32>
    %cst_42 = arith.constant dense<0.000000e+00> : vector<16x128xf32>
    %39 = tpu.matmul %36, %38, %cst_42 {dimension_numbers = #tpu.dot_dimension_numbers<[1], [0], [0], [1], [0, 0, 1, 1], [], []>} : vector<16x128xf32>, vector<128x128xf32>, vector<16x128xf32> -> vector<16x128xf32>
    %40 = arith.addf %35, %39 : vector<16x128xf32>
    %c2_43 = arith.constant 2 : index
    %c0_44 = arith.constant 0 : index
    %41 = vector.load %arg7[%c2_43, %c0_44] : memref<18x128xf32, #tpu.memory_space<vmem>>, vector<16x128xf32>
    %c2_45 = arith.constant 2 : index
    %c0_46 = arith.constant 0 : index
    %c0_47 = arith.constant 0 : index
    %42 = vector.load %arg3[%c2_45, %c0_46, %c0_47] : memref<3x128x128xf32, #tpu.memory_space<vmem>>, vector<1x128x128xf32>
    %43 = vector.shape_cast %42 : vector<1x128x128xf32> to vector<128x128xf32>
    %cst_48 = arith.constant dense<0.000000e+00> : vector<16x128xf32>
    %44 = tpu.matmul %41, %43, %cst_48 {dimension_numbers = #tpu.dot_dimension_numbers<[1], [0], [0], [1], [0, 0, 1, 1], [], []>} : vector<16x128xf32>, vector<128x128xf32>, vector<16x128xf32> -> vector<16x128xf32>
    %45 = arith.addf %40, %44 : vector<16x128xf32>
    %c0_49 = arith.constant 0 : index
    %c0_50 = arith.constant 0 : index
    %46 = vector.load %arg5[%c0_49, %c0_50] : memref<1x128xf32, #tpu.memory_space<vmem>>, vector<1x128xf32>
    %47 = vector.broadcast %46 : vector<1x128xf32> to vector<16x128xf32>
    %48 = arith.addf %45, %47 : vector<16x128xf32>
    %49 = arith.addf %48, %1 : vector<16x128xf32>
    %c0_51 = arith.constant 0 : index
    %c0_52 = arith.constant 0 : index
    %c0_53 = arith.constant 0 : index
    %50 = vector.load %arg6[%c0_51, %c0_52, %c0_53] : memref<1x16x128xf32, #tpu.memory_space<vmem>>, vector<1x16x128xf32>
    %51 = vector.shape_cast %50 : vector<1x16x128xf32> to vector<16x128xf32>
    %52 = vector.shape_cast %49 : vector<16x128xf32> to vector<1x16x128xf32>
    tpu.vector_store %arg6[%c0_51, %c0_52, %c0_53], %52 {strides = array<i32>} : memref<1x16x128xf32, #tpu.memory_space<vmem>>, vector<1x16x128xf32>,
    return
  }
  func.func @transform_0(%arg0: i32) -> (i32, i32, i32) {
    %c0_i32 = arith.constant 0 : i32
    %c0_i32_0 = arith.constant 0 : i32
    %c0_i32_1 = arith.constant 0 : i32
    return %arg0, %c0_i32, %c0_i32_0 : i32, i32, i32
  }
  func.func @transform_1(%arg0: i32) -> (i32, i32, i32) {
    %c0_i32 = arith.constant 0 : i32
    %c0_i32_0 = arith.constant 0 : i32
    %c0_i32_1 = arith.constant 0 : i32
    %c0_i32_2 = arith.constant 0 : i32
    return %c0_i32, %c0_i32_0, %c0_i32_1 : i32, i32, i32
  }
  func.func @transform_2(%arg0: i32) -> (i32, i32, i32) {
    %c0_i32 = arith.constant 0 : i32
    %c0_i32_0 = arith.constant 0 : i32
    %c0_i32_1 = arith.constant 0 : i32
    %c0_i32_2 = arith.constant 0 : i32
    return %c0_i32, %c0_i32_0, %c0_i32_1 : i32, i32, i32
  }
  func.func @transform_3(%arg0: i32) -> (i32, i32) {
    %c0_i32 = arith.constant 0 : i32
    %c0_i32_0 = arith.constant 0 : i32
    %c0_i32_1 = arith.constant 0 : i32
    return %c0_i32, %c0_i32_0 : i32, i32
  }
  func.func @transform_4(%arg0: i32) -> (i32, i32) {
    %c0_i32 = arith.constant 0 : i32
    %c0_i32_0 = arith.constant 0 : i32
    %c0_i32_1 = arith.constant 0 : i32
    return %c0_i32, %c0_i32_0 : i32, i32
  }
  func.func @transform_5(%arg0: i32) -> (i32, i32, i32) {
    %c0_i32 = arith.constant 0 : i32
    %c0_i32_0 = arith.constant 0 : i32
    %c0_i32_1 = arith.constant 0 : i32
    return %arg0, %c0_i32, %c0_i32_0 : i32, i32, i32
  }
}

</mosaic_0001>

<llo_original>
// kernel: residual_conv_unit.1
$region0: #{residual_conv_unit.1}
  #allocation0 [shape = 'u32[]', space=smem, size = 0x4, offset = 0x4, fixed_abs, tag = 'smem constant byte address 0x4 - core index']
  #allocation1 [shape = 'u32[144,128]{1,0:T(1,128)}', space=vmem, size = 0x12000, scoped, tag = 'internal scratch']
  #allocation2 [shape = 'f32[18,128]{1,0:T(8,128)}', space=vmem, size = 0x3000, scoped, tag = 'scratch operand']
  %s0 = inlined_call_operand.vmem [shape: f32[2,16,128], index: 0, kind: input, shape index: {}]
  %s1 = inlined_call_operand.vmem [shape: f32[3,128,128], index: 1, kind: input, shape index: {}]
  %s2 = inlined_call_operand.vmem [shape: f32[3,128,128], index: 2, kind: input, shape index: {}]
  %s3 = inlined_call_operand.vmem [shape: f32[1,128], index: 3, kind: input, shape index: {}]
  %s4 = inlined_call_operand.vmem [shape: f32[1,128], index: 4, kind: input, shape index: {}]
  %s5 = inlined_call_operand.vmem [shape: f32[2,16,128], index: 5, kind: output, shape index: {}]
  %s6 = sld [smem:[#allocation0]]
  $region53: #{residual_conv_unit.1} parent=0
    _
  %s8 = ssub.s32 1, %s6
  %s9 = scalar_select 0, %s8, %s6
  loop: start=0, step=1, limit=4
  $region2: #{residual_conv_unit.1} parent=0 // loop_pre_header
    _
  $region3: #{residual_conv_unit.1} parent=0 // loop_header
    %s11 = sphi 0, %s15
    %p12 = scmp.ge.s32.totalorder %s11, 4
    %s21 = sphi 0, %s23
    %s24 = sphi 0, %s21
    %s25 = sphi 0, %s24
    %s41 = sphi 0, %s25
    %s45 = sphi 0, %s45
    %s47 = sphi 0, %s45
    %s48 = sphi 0, %s47
    %s62 = sphi 0, %s48
    %s66 = sphi 0, %s66
    %s68 = sphi 0, %s66
    %s69 = sphi 0, %s68
    %s83 = sphi 0, %s69
    %s87 = sphi 0, %s87
    %s89 = sphi 0, %s87
    %s90 = sphi 0, %s89
    %s104 = sphi 0, %s90
    %s108 = sphi 0, %s108
    %s110 = sphi 0, %s108
    %s111 = sphi 0, %s110
    %s125 = sphi 0, %s111
    %s131 = sphi 0, %s133
    %s134 = sphi 0, %s131
    %s135 = sphi 0, %s134
    %s151 = sphi 0, %s135
  $region4: #{residual_conv_unit.1} parent=0 // loop_header_branch
    %14 = sbr.rel (%p12) target = $region8
  $region5: #{residual_conv_unit.1} parent=0 // loop_body
    %s16 = ssub.s32 %s11, 1
    %s17 = ssub.s32 %s11, 2
    %s18 = sadd.s32 %s11, 1
    %s19 = ssub.s32 %s11, %s18
    %p20 = scmp.eq.s32.totalorder %s19, 0
    %s22 = sadd.s32 %s21, 1
    %s23 = scalar_select %p20, %s21, %s22
    %p26 = pneg %p20
    %p27 = scmp.eq.s32.totalorder %s11, 1
    %p28 = por %p26, %p27
    %p29 = scmp.ne.s32.totalorder %s21, %s24
    %p30 = scmp.eq.s32.totalorder %s11, 0
    %p31 = por %p29, %p30
    %p32 = scmp.ne.s32.totalorder %s21, %s24
    %p33 = scmp.eq.s32.totalorder %s16, 1
    %p34 = por %p32, %p33
    %p35 = scmp.ne.s32.totalorder %s24, %s25
    %p36 = scmp.eq.s32.totalorder %s16, 0
    %p37 = por %p35, %p36
    %p38 = scmp.ne.s32.totalorder %s24, %s25
    %p39 = scmp.eq.s32.totalorder %s17, 1
    %p40 = por %p38, %p39
    %p42 = scmp.ne.s32.totalorder %s25, %s41
    %p43 = scmp.eq.s32.totalorder %s17, 0
    %p44 = por %p42, %p43
    %s46 = sadd.s32 %s45, 1
    %p49 = scmp.eq.s32.totalorder %s11, 1
    %p50 = scmp.ne.s32.totalorder %s45, %s47
    %p51 = scmp.eq.s32.totalorder %s11, 0
    %p52 = por %p50, %p51
    %p53 = scmp.ne.s32.totalorder %s45, %s47
    %p54 = scmp.eq.s32.totalorder %s16, 1
    %p55 = por %p53, %p54
    %p56 = scmp.ne.s32.totalorder %s47, %s48
    %p57 = scmp.eq.s32.totalorder %s16, 0
    %p58 = por %p56, %p57
    %p59 = scmp.ne.s32.totalorder %s47, %s48
    %p60 = scmp.eq.s32.totalorder %s17, 1
    %p61 = por %p59, %p60
    %p63 = scmp.ne.s32.totalorder %s48, %s62
    %p64 = scmp.eq.s32.totalorder %s17, 0
    %p65 = por %p63, %p64
    %s67 = sadd.s32 %s66, 1
    %p70 = scmp.eq.s32.totalorder %s11, 1
    %p71 = scmp.ne.s32.totalorder %s66, %s68
    %p72 = scmp.eq.s32.totalorder %s11, 0
    %p73 = por %p71, %p72
    %p74 = scmp.ne.s32.totalorder %s66, %s68
    %p75 = scmp.eq.s32.totalorder %s16, 1
    %p76 = por %p74, %p75
    %p77 = scmp.ne.s32.totalorder %s68, %s69
    %p78 = scmp.eq.s32.totalorder %s16, 0
    %p79 = por %p77, %p78
    %p80 = scmp.ne.s32.totalorder %s68, %s69
    %p81 = scmp.eq.s32.totalorder %s17, 1
    %p82 = por %p80, %p81
    %p84 = scmp.ne.s32.totalorder %s69, %s83
    %p85 = scmp.eq.s32.totalorder %s17, 0
    %p86 = por %p84, %p85
    %s88 = sadd.s32 %s87, 1
    %p91 = scmp.eq.s32.totalorder %s11, 1
    %p92 = scmp.ne.s32.totalorder %s87, %s89
    %p93 = scmp.eq.s32.totalorder %s11, 0
    %p94 = por %p92, %p93
    %p95 = scmp.ne.s32.totalorder %s87, %s89
    %p96 = scmp.eq.s32.totalorder %s16, 1
    %p97 = por %p95, %p96
    %p98 = scmp.ne.s32.totalorder %s89, %s90
    %p99 = scmp.eq.s32.totalorder %s16, 0
    %p100 = por %p98, %p99
    %p101 = scmp.ne.s32.totalorder %s89, %s90
    %p102 = scmp.eq.s32.totalorder %s17, 1
    %p103 = por %p101, %p102
    %p105 = scmp.ne.s32.totalorder %s90, %s104
    %p106 = scmp.eq.s32.totalorder %s17, 0
    %p107 = por %p105, %p106
    %s109 = sadd.s32 %s108, 1
    %p112 = scmp.eq.s32.totalorder %s11, 1
    %p113 = scmp.ne.s32.totalorder %s108, %s110
    %p114 = scmp.eq.s32.totalorder %s11, 0
    %p115 = por %p113, %p114
    %p116 = scmp.ne.s32.totalorder %s108, %s110
    %p117 = scmp.eq.s32.totalorder %s16, 1
    %p118 = por %p116, %p117
    %p119 = scmp.ne.s32.totalorder %s110, %s111
    %p120 = scmp.eq.s32.totalorder %s16, 0
    %p121 = por %p119, %p120
    %p122 = scmp.ne.s32.totalorder %s110, %s111
    %p123 = scmp.eq.s32.totalorder %s17, 1
    %p124 = por %p122, %p123
    %p126 = scmp.ne.s32.totalorder %s111, %s125
    %p127 = scmp.eq.s32.totalorder %s17, 0
    %p128 = por %p126, %p127
    %s129 = ssub.s32 %s11, %s18
    %p130 = scmp.eq.s32.totalorder %s129, 0
    %s132 = sadd.s32 %s131, 1
    %s133 = scalar_select %p130, %s131, %s132
    %p136 = pneg %p130
    %p137 = scmp.eq.s32.totalorder %s11, 1
    %p138 = por %p136, %p137
    %p139 = scmp.ne.s32.totalorder %s131, %s134
    %p140 = scmp.eq.s32.totalorder %s11, 0
    %p141 = por %p139, %p140
    %p142 = scmp.ne.s32.totalorder %s131, %s134
    %p143 = scmp.eq.s32.totalorder %s16, 1
    %p144 = por %p142, %p143
    %p145 = scmp.ne.s32.totalorder %s134, %s135
    %p146 = scmp.eq.s32.totalorder %s16, 0
    %p147 = por %p145, %p146
    %p148 = scmp.ne.s32.totalorder %s134, %s135
    %p149 = scmp.eq.s32.totalorder %s17, 1
    %p150 = por %p148, %p149
    %p152 = scmp.ne.s32.totalorder %s135, %s151
    %p153 = scmp.eq.s32.totalorder %s17, 0
    %p154 = por %p152, %p153
    %p155 = scmp.le.s32.totalorder 1, %s11
    %p156 = scmp.lt.s32.totalorder %s11, 3
    %p157 = pnand %p155, %p156
    %p158 = pneg %p157
    // Predicated region
    $region9: #{residual_conv_unit.1} parent=5 // pred_check
      _
    $region10: #{residual_conv_unit.1} parent=5 // pred_check_branch
      %160 = sbr.rel (%p157) target = $region12
    $region11: #{residual_conv_unit.1} parent=5 // pred_region
      %s161 = ssub.s32 %s11, 1
      // Predicated region
      $region13: #{residual_conv_unit.1} parent=11 // pred_check
        %p162 = pneg %p58
      $region14: #{residual_conv_unit.1} parent=11 // pred_check_branch
        %164 = sbr.rel (%p162) target = $region16
      $region15: #{residual_conv_unit.1} parent=11 // pred_region
        _
      $region16: #{residual_conv_unit.1} parent=11 // pred_fallthru
        _
      // Predicated region
      $region17: #{residual_conv_unit.1} parent=11 // pred_check
        %p165 = pneg %p79
      $region18: #{residual_conv_unit.1} parent=11 // pred_check_branch
        %167 = sbr.rel (%p165) target = $region20
      $region19: #{residual_conv_unit.1} parent=11 // pred_region
        _
      $region20: #{residual_conv_unit.1} parent=11 // pred_fallthru
        _
      // Predicated region
      $region21: #{residual_conv_unit.1} parent=11 // pred_check
        %p168 = pneg %p100
      $region22: #{residual_conv_unit.1} parent=11 // pred_check_branch
        %170 = sbr.rel (%p168) target = $region24
      $region23: #{residual_conv_unit.1} parent=11 // pred_region
        _
      $region24: #{residual_conv_unit.1} parent=11 // pred_fallthru
        _
      // Predicated region
      $region25: #{residual_conv_unit.1} parent=11 // pred_check
        %p171 = pneg %p121
      $region26: #{residual_conv_unit.1} parent=11 // pred_check_branch
        %173 = sbr.rel (%p171) target = $region28
      $region27: #{residual_conv_unit.1} parent=11 // pred_region
        _
      $region28: #{residual_conv_unit.1} parent=11 // pred_fallthru
        _
    $region12: #{residual_conv_unit.1} parent=5 // pred_fallthru
      _
    %p174 = scmp.lt.s32.totalorder %s11, 2
    // Predicated region
    $region29: #{residual_conv_unit.1} parent=5 // pred_check
      %p175 = pneg %p174
    $region30: #{residual_conv_unit.1} parent=5 // pred_check_branch
      %177 = sbr.rel (%p175) target = $region32
    $region31: #{residual_conv_unit.1} parent=5 // pred_region
      // Predicated region
      $region33: #{residual_conv_unit.1} parent=31 // pred_check
        %p178 = pneg %p31
      $region34: #{residual_conv_unit.1} parent=31 // pred_check_branch
        %180 = sbr.rel (%p178) target = $region36
      $region35: #{residual_conv_unit.1} parent=31 // pred_region
        %p181 = scmp.lt.s32.totalorder %s11, 1
        %s182 = scalar_select %p181, %s11, 1
        %s183 = smul.addr %s182, 2
        %s184 = smul.addr %s183, 8
        %s185 = scalar_lea.vmem %s0, %s184
      $region36: #{residual_conv_unit.1} parent=31 // pred_fallthru
        _
    $region32: #{residual_conv_unit.1} parent=5 // pred_fallthru
      _
    %p186 = scmp.le.s32.totalorder 1, %s11
    %p187 = scmp.lt.s32.totalorder %s11, 3
    %p188 = pnand %p186, %p187
    %p189 = pneg %p188
    // Predicated region
    $region37: #{residual_conv_unit.1} parent=5 // pred_check
      _
    $region38: #{residual_conv_unit.1} parent=5 // pred_check_branch
      %191 = sbr.rel (%p188) target = $region40
    $region39: #{residual_conv_unit.1} parent=5 // pred_region
      %s192 = ssub.s32 %s11, 1
      %p193 = scmp.lt.s32.totalorder %s16, 1
      %s194 = scalar_select %p193, %s16, 1
      %s195 = smul.addr %s194, 2
      %s196 = smul.addr %s195, 8
      %s197 = scalar_lea.vmem %s0, %s196
      %p198 = pneg %p37
      %p199 = pneg %p34
      %p200 = pneg %p58
      %p201 = pneg %p55
      %p202 = pneg %p79
      %p203 = pneg %p76
      %p204 = pneg %p100
      %p205 = pneg %p97
      %p206 = pneg %p121
      %p207 = pneg %p118
      %p208 = pneg %p147
      %p209 = pneg %p144
      %p210 = scmp.lt.s32.totalorder %s16, 1
      %s211 = scalar_select %p210, %s16, 1
      %s212 = smul.addr %s211, 2
      %s213 = smul.addr %s212, 8
      %s214 = scalar_lea.vmem %s5, %s213
      %p215 = scmp.lt.s32.totalorder %s16, 1
      %s216 = scalar_select %p215, %s16, 1
      %s217 = smul.addr %s216, 2
      %s218 = smul.addr %s217, 8
      %s219 = scalar_lea.vmem %s0, %s218
      %p220 = scmp.lt.s32.totalorder %s16, 1
      %s221 = scalar_select %p220, %s16, 1
      %s222 = smul.addr %s221, 2
      %s223 = smul.addr %s222, 8
      %s224 = scalar_lea.vmem %s5, %s223
      %v225 = vld [vmem:[%s219] sm:$0xff]
      %v226 = vld [vmem:[%s219 + $0x8] sm:$0xff]
      %227 = vst [vmem:[#allocation2] sm:$0x1] 0.0
      %228 = vst [vmem:[#allocation2 + $0x11] sm:$0x1] 0.0
      %v229 = vmax.f32 %v225, 0.0
      %v230 = vmax.f32 %v226, 0.0
      %231 = vst [vmem:[#allocation2 + $0x1] sm:$0xff] %v229
      %232 = vst [vmem:[#allocation2 + $0x9] sm:$0xff] %v230
      %v233 = vld [vmem:[#allocation2] sm:$0xff]
      %v234 = vld [vmem:[#allocation2 + $0x8] sm:$0xff]
      %v235 = vld [vmem:[%s1] sm:$0xff]
      %v236 = vld [vmem:[%s1 + $0x8] sm:$0xff]
      %v237 = vld [vmem:[%s1 + $0x10] sm:$0xff]
      %v238 = vld [vmem:[%s1 + $0x18] sm:$0xff]
      %v239 = vld [vmem:[%s1 + $0x20] sm:$0xff]
      %v240 = vld [vmem:[%s1 + $0x28] sm:$0xff]
      %v241 = vld [vmem:[%s1 + $0x30] sm:$0xff]
      %v242 = vld [vmem:[%s1 + $0x38] sm:$0xff]
      %v243 = vld [vmem:[%s1 + $0x40] sm:$0xff]
      %v244 = vld [vmem:[%s1 + $0x48] sm:$0xff]
      %v245 = vld [vmem:[%s1 + $0x50] sm:$0xff]
      %v246 = vld [vmem:[%s1 + $0x58] sm:$0xff]
      %v247 = vld [vmem:[%s1 + $0x60] sm:$0xff]
      %v248 = vld [vmem:[%s1 + $0x68] sm:$0xff]
      %v249 = vld [vmem:[%s1 + $0x70] sm:$0xff]
      %v250 = vld [vmem:[%s1 + $0x78] sm:$0xff]
      %v251 = vld [vmem:[#allocation2 + $0x1] sm:$0xff]
      %v252 = vld [vmem:[#allocation2 + $0x9] sm:$0xff]
      %s253 = scalar_lea.vmem %s1, 128
      %v254 = vld [vmem:[%s253] sm:$0xff]
      %v255 = vld [vmem:[%s253 + $0x8] sm:$0xff]
      %v256 = vld [vmem:[%s253 + $0x10] sm:$0xff]
      %v257 = vld [vmem:[%s253 + $0x18] sm:$0xff]
      %v258 = vld [vmem:[%s253 + $0x20] sm:$0xff]
      %v259 = vld [vmem:[%s253 + $0x28] sm:$0xff]
      %v260 = vld [vmem:[%s253 + $0x30] sm:$0xff]
      %v261 = vld [vmem:[%s253 + $0x38] sm:$0xff]
      %v262 = vld [vmem:[%s253 + $0x40] sm:$0xff]
      %v263 = vld [vmem:[%s253 + $0x48] sm:$0xff]
      %v264 = vld [vmem:[%s253 + $0x50] sm:$0xff]
      %v265 = vld [vmem:[%s253 + $0x58] sm:$0xff]
      %v266 = vld [vmem:[%s253 + $0x60] sm:$0xff]
      %v267 = vld [vmem:[%s253 + $0x68] sm:$0xff]
      %v268 = vld [vmem:[%s253 + $0x70] sm:$0xff]
      %v269 = vld [vmem:[%s253 + $0x78] sm:$0xff]
      %270 = vmatprep.subr.mxu0 0.0
      %271 = vmatpush1.msra.mxu0 %v254
      %272 = vmatprep.subr.mxu0 0.0
      %273 = vmatpush1.msra.mxu0 %v255
      %274 = vmatprep.subr.mxu0 0.0
      %275 = vmatpush1.msra.mxu0 %v256
      %276 = vmatprep.subr.mxu0 0.0
      %277 = vmatpush1.msra.mxu0 %v257
      %278 = vmatprep.subr.mxu0 0.0
      %279 = vmatpush1.msra.mxu0 %v258
      %280 = vmatprep.subr.mxu0 0.0
      %281 = vmatpush1.msra.mxu0 %v259
      %282 = vmatprep.subr.mxu0 0.0
      %283 = vmatpush1.msra.mxu0 %v260
      %284 = vmatprep.subr.mxu0 0.0
      %285 = vmatpush1.msra.mxu0 %v261
      %286 = vmatprep.subr.mxu0 0.0
      %287 = vmatpush1.msra.mxu0 %v262
      %288 = vmatprep.subr.mxu0 0.0
      %289 = vmatpush1.msra.mxu0 %v263
      %290 = vmatprep.subr.mxu0 0.0
      %291 = vmatpush1.msra.mxu0 %v264
      %292 = vmatprep.subr.mxu0 0.0
      %293 = vmatpush1.msra.mxu0 %v265
      %294 = vmatprep.subr.mxu0 0.0
      %295 = vmatpush1.msra.mxu0 %v266
      %296 = vmatprep.subr.mxu0 0.0
      %297 = vmatpush1.msra.mxu0 %v267
      %298 = vmatprep.subr.mxu0 0.0
      %299 = vmatpush1.msra.mxu0 %v268
      %300 = vmatprep.subr.mxu0 0.0
      %301 = vmatpush1.msra.mxu0 %v269
      %302 = vmatprep.subr.mxu0 0.0
      %303 = vmatpush1.msra.mxu0 0.0
      %304 = vmatprep.subr.mxu0 0.0
      %305 = vmatpush1.msra.mxu0 0.0
      %306 = vmatprep.subr.mxu0 0.0
      %307 = vmatpush1.msra.mxu0 0.0
      %308 = vmatprep.subr.mxu0 0.0
      %309 = vmatpush1.msra.mxu0 0.0
      %310 = vmatprep.subr.mxu0 0.0
      %311 = vmatpush1.msra.mxu0 0.0
      %312 = vmatprep.subr.mxu0 0.0
      %313 = vmatpush1.msra.mxu0 0.0
      %314 = vmatprep.subr.mxu0 0.0
      %315 = vmatpush1.msra.mxu0 0.0
      %316 = vmatprep.subr.mxu0 0.0
      %317 = vmatpush1.msra.mxu0 0.0
      %318 = vmatprep.subr.mxu0 0.0
      %319 = vmatpush1.msra.mxu0 0.0
      %320 = vmatprep.subr.mxu0 0.0
      %321 = vmatpush1.msra.mxu0 0.0
      %322 = vmatprep.subr.mxu0 0.0
      %323 = vmatpush1.msra.mxu0 0.0
      %324 = vmatprep.subr.mxu0 0.0
      %325 = vmatpush1.msra.mxu0 0.0
      %326 = vmatprep.subr.mxu0 0.0
      %327 = vmatpush1.msra.mxu0 0.0
      %328 = vmatprep.subr.mxu0 0.0
      %329 = vmatpush1.msra.mxu0 0.0
      %330 = vmatprep.subr.mxu0 0.0
      %331 = vmatpush1.msra.mxu0 0.0
      %332 = vmatprep.subr.mxu0 0.0
      %333 = vmatpush1.msra.mxu0 0.0
      %334 = vmatprep.mubr.f32.mxu0 0.0
      %335 = vmatmul.mubr.f32.gmra.mrb[0].mxu0 %v251
      %v336 = vpop.f32.mrb[0].mxu0
      %v337 = vadd.f32 0.0, %v336
      %v338 = vpop.f32.mrb[0].mxu0
      %339 = vmatprep.mubr.f32.mxu0 0.0
      %340 = vmatmul.mubr.f32.gmra.mrb[0].mxu0 %v252
      %v341 = vpop.f32.mrb[0].mxu0
      %v342 = vadd.f32 0.0, %v341
      %v343 = vpop.f32.mrb[0].mxu0
      %344 = vdwg.mxu0
      %345 = vmatprep.subr.mxu0 0.0
      %346 = vmatpush1.msra.mxu0 %v235
      %347 = vmatprep.subr.mxu0 0.0
      %348 = vmatpush1.msra.mxu0 %v236
      %349 = vmatprep.subr.mxu0 0.0
      %350 = vmatpush1.msra.mxu0 %v237
      %351 = vmatprep.subr.mxu0 0.0
      %352 = vmatpush1.msra.mxu0 %v238
      %353 = vmatprep.subr.mxu0 0.0
      %354 = vmatpush1.msra.mxu0 %v239
      %355 = vmatprep.subr.mxu0 0.0
      %356 = vmatpush1.msra.mxu0 %v240
      %357 = vmatprep.subr.mxu0 0.0
      %358 = vmatpush1.msra.mxu0 %v241
      %359 = vmatprep.subr.mxu0 0.0
      %360 = vmatpush1.msra.mxu0 %v242
      %361 = vmatprep.subr.mxu0 0.0
      %362 = vmatpush1.msra.mxu0 %v243
      %363 = vmatprep.subr.mxu0 0.0
      %364 = vmatpush1.msra.mxu0 %v244
      %365 = vmatprep.subr.mxu0 0.0
      %366 = vmatpush1.msra.mxu0 %v245
      %367 = vmatprep.subr.mxu0 0.0
      %368 = vmatpush1.msra.mxu0 %v246
      %369 = vmatprep.subr.mxu0 0.0
      %370 = vmatpush1.msra.mxu0 %v247
      %371 = vmatprep.subr.mxu0 0.0
      %372 = vmatpush1.msra.mxu0 %v248
      %373 = vmatprep.subr.mxu0 0.0
      %374 = vmatpush1.msra.mxu0 %v249
      %375 = vmatprep.subr.mxu0 0.0
      %376 = vmatpush1.msra.mxu0 %v250
      %377 = vmatprep.subr.mxu0 0.0
      %378 = vmatpush1.msra.mxu0 0.0
      %379 = vmatprep.subr.mxu0 0.0
      %380 = vmatpush1.msra.mxu0 0.0
      %381 = vmatprep.subr.mxu0 0.0
      %382 = vmatpush1.msra.mxu0 0.0
      %383 = vmatprep.subr.mxu0 0.0
      %384 = vmatpush1.msra.mxu0 0.0
      %385 = vmatprep.subr.mxu0 0.0
      %386 = vmatpush1.msra.mxu0 0.0
      %387 = vmatprep.subr.mxu0 0.0
      %388 = vmatpush1.msra.mxu0 0.0
      %389 = vmatprep.subr.mxu0 0.0
      %390 = vmatpush1.msra.mxu0 0.0
      %391 = vmatprep.subr.mxu0 0.0
      %392 = vmatpush1.msra.mxu0 0.0
      %393 = vmatprep.subr.mxu0 0.0
      %394 = vmatpush1.msra.mxu0 0.0
      %395 = vmatprep.subr.mxu0 0.0
      %396 = vmatpush1.msra.mxu0 0.0
      %397 = vmatprep.subr.mxu0 0.0
      %398 = vmatpush1.msra.mxu0 0.0
      %399 = vmatprep.subr.mxu0 0.0
      %400 = vmatpush1.msra.mxu0 0.0
      %401 = vmatprep.subr.mxu0 0.0
      %402 = vmatpush1.msra.mxu0 0.0
      %403 = vmatprep.subr.mxu0 0.0
      %404 = vmatpush1.msra.mxu0 0.0
      %405 = vmatprep.subr.mxu0 0.0
      %406 = vmatpush1.msra.mxu0 0.0
      %407 = vmatprep.subr.mxu0 0.0
      %408 = vmatpush1.msra.mxu0 0.0
      %409 = vmatprep.mubr.f32.mxu0 0.0
      %410 = vmatmul.mubr.f32.gmra.mrb[0].mxu0 %v233
      %v411 = vpop.f32.mrb[0].mxu0
      %v412 = vadd.f32 %v337, %v411
      %v413 = vpop.f32.mrb[0].mxu0
      %414 = vmatprep.mubr.f32.mxu0 0.0
      %415 = vmatmul.mubr.f32.gmra.mrb[0].mxu0 %v234
      %v416 = vpop.f32.mrb[0].mxu0
      %v417 = vadd.f32 %v342, %v416
      %v418 = vpop.f32.mrb[0].mxu0
      %419 = vdwg.mxu0
      %v420 = vld [vmem:[#allocation2 + $0x2] sm:$0xff]
      %v421 = vld [vmem:[#allocation2 + $0xa] sm:$0xff]
      %s422 = scalar_lea.vmem %s1, 256
      %v423 = vld [vmem:[%s422] sm:$0xff]
      %v424 = vld [vmem:[%s422 + $0x8] sm:$0xff]
      %v425 = vld [vmem:[%s422 + $0x10] sm:$0xff]
      %v426 = vld [vmem:[%s422 + $0x18] sm:$0xff]
      %v427 = vld [vmem:[%s422 + $0x20] sm:$0xff]
      %v428 = vld [vmem:[%s422 + $0x28] sm:$0xff]
      %v429 = vld [vmem:[%s422 + $0x30] sm:$0xff]
      %v430 = vld [vmem:[%s422 + $0x38] sm:$0xff]
      %v431 = vld [vmem:[%s422 + $0x40] sm:$0xff]
      %v432 = vld [vmem:[%s422 + $0x48] sm:$0xff]
      %v433 = vld [vmem:[%s422 + $0x50] sm:$0xff]
      %v434 = vld [vmem:[%s422 + $0x58] sm:$0xff]
      %v435 = vld [vmem:[%s422 + $0x60] sm:$0xff]
      %v436 = vld [vmem:[%s422 + $0x68] sm:$0xff]
      %v437 = vld [vmem:[%s422 + $0x70] sm:$0xff]
      %v438 = vld [vmem:[%s422 + $0x78] sm:$0xff]
      %439 = vmatprep.subr.mxu0 0.0
      %440 = vmatpush1.msra.mxu0 %v423
      %441 = vmatprep.subr.mxu0 0.0
      %442 = vmatpush1.msra.mxu0 %v424
      %443 = vmatprep.subr.mxu0 0.0
      %444 = vmatpush1.msra.mxu0 %v425
      %445 = vmatprep.subr.mxu0 0.0
      %446 = vmatpush1.msra.mxu0 %v426
      %447 = vmatprep.subr.mxu0 0.0
      %448 = vmatpush1.msra.mxu0 %v427
      %449 = vmatprep.subr.mxu0 0.0
      %450 = vmatpush1.msra.mxu0 %v428
      %451 = vmatprep.subr.mxu0 0.0
      %452 = vmatpush1.msra.mxu0 %v429
      %453 = vmatprep.subr.mxu0 0.0
      %454 = vmatpush1.msra.mxu0 %v430
      %455 = vmatprep.subr.mxu0 0.0
      %456 = vmatpush1.msra.mxu0 %v431
      %457 = vmatprep.subr.mxu0 0.0
      %458 = vmatpush1.msra.mxu0 %v432
      %459 = vmatprep.subr.mxu0 0.0
      %460 = vmatpush1.msra.mxu0 %v433
      %461 = vmatprep.subr.mxu0 0.0
      %462 = vmatpush1.msra.mxu0 %v434
      %463 = vmatprep.subr.mxu0 0.0
      %464 = vmatpush1.msra.mxu0 %v435
      %465 = vmatprep.subr.mxu0 0.0
      %466 = vmatpush1.msra.mxu0 %v436
      %467 = vmatprep.subr.mxu0 0.0
      %468 = vmatpush1.msra.mxu0 %v437
      %469 = vmatprep.subr.mxu0 0.0
      %470 = vmatpush1.msra.mxu0 %v438
      %471 = vmatprep.subr.mxu0 0.0
      %472 = vmatpush1.msra.mxu0 0.0
      %473 = vmatprep.subr.mxu0 0.0
      %474 = vmatpush1.msra.mxu0 0.0
      %475 = vmatprep.subr.mxu0 0.0
      %476 = vmatpush1.msra.mxu0 0.0
      %477 = vmatprep.subr.mxu0 0.0
      %478 = vmatpush1.msra.mxu0 0.0
      %479 = vmatprep.subr.mxu0 0.0
      %480 = vmatpush1.msra.mxu0 0.0
      %481 = vmatprep.subr.mxu0 0.0
      %482 = vmatpush1.msra.mxu0 0.0
      %483 = vmatprep.subr.mxu0 0.0
      %484 = vmatpush1.msra.mxu0 0.0
      %485 = vmatprep.subr.mxu0 0.0
      %486 = vmatpush1.msra.mxu0 0.0
      %487 = vmatprep.subr.mxu0 0.0
      %488 = vmatpush1.msra.mxu0 0.0
      %489 = vmatprep.subr.mxu0 0.0
      %490 = vmatpush1.msra.mxu0 0.0
      %491 = vmatprep.subr.mxu0 0.0
      %492 = vmatpush1.msra.mxu0 0.0
      %493 = vmatprep.subr.mxu0 0.0
      %494 = vmatpush1.msra.mxu0 0.0
      %495 = vmatprep.subr.mxu0 0.0
      %496 = vmatpush1.msra.mxu0 0.0
      %497 = vmatprep.subr.mxu0 0.0
      %498 = vmatpush1.msra.mxu0 0.0
      %499 = vmatprep.subr.mxu0 0.0
      %500 = vmatpush1.msra.mxu0 0.0
      %501 = vmatprep.subr.mxu0 0.0
      %502 = vmatpush1.msra.mxu0 0.0
      %503 = vmatprep.mubr.f32.mxu0 0.0
      %504 = vmatmul.mubr.f32.gmra.mrb[0].mxu0 %v420
      %v505 = vpop.f32.mrb[0].mxu0
      %v506 = vadd.f32 0.0, %v505
      %v507 = vpop.f32.mrb[0].mxu0
      %508 = vmatprep.mubr.f32.mxu0 0.0
      %509 = vmatmul.mubr.f32.gmra.mrb[0].mxu0 %v421
      %v510 = vpop.f32.mrb[0].mxu0
      %v511 = vadd.f32 0.0, %v510
      %v512 = vpop.f32.mrb[0].mxu0
      %513 = vdwg.mxu0
      %v514 = vadd.f32 %v412, %v506
      %v515 = vadd.f32 %v417, %v511
      %v516 = vld [vmem:[%s3] sm:$0x1]
      %v518 = vlaneseq
      %v519 = vshrl.u32 %v518, 7
      %v520 = vsub.s32 0, %v519
      %v521 = vrot.slane %v516, %v520
      %v523 = vadd.f32 %v514, %v521
      %v524 = vadd.f32 %v515, %v521
      %v525 = vmax.f32 %v523, 0.0
      %v526 = vmax.f32 %v524, 0.0
      %527 = vst [vmem:[#allocation2 + $0x1] sm:$0xff] %v525
      %528 = vst [vmem:[#allocation2 + $0x9] sm:$0xff] %v526
      %v529 = vld [vmem:[#allocation2] sm:$0xff]
      %v530 = vld [vmem:[#allocation2 + $0x8] sm:$0xff]
      %v531 = vld [vmem:[%s2] sm:$0xff]
      %v532 = vld [vmem:[%s2 + $0x8] sm:$0xff]
      %v533 = vld [vmem:[%s2 + $0x10] sm:$0xff]
      %v534 = vld [vmem:[%s2 + $0x18] sm:$0xff]
      %v535 = vld [vmem:[%s2 + $0x20] sm:$0xff]
      %v536 = vld [vmem:[%s2 + $0x28] sm:$0xff]
      %v537 = vld [vmem:[%s2 + $0x30] sm:$0xff]
      %v538 = vld [vmem:[%s2 + $0x38] sm:$0xff]
      %v539 = vld [vmem:[%s2 + $0x40] sm:$0xff]
      %v540 = vld [vmem:[%s2 + $0x48] sm:$0xff]
      %v541 = vld [vmem:[%s2 + $0x50] sm:$0xff]
      %v542 = vld [vmem:[%s2 + $0x58] sm:$0xff]
      %v543 = vld [vmem:[%s2 + $0x60] sm:$0xff]
      %v544 = vld [vmem:[%s2 + $0x68] sm:$0xff]
      %v545 = vld [vmem:[%s2 + $0x70] sm:$0xff]
      %v546 = vld [vmem:[%s2 + $0x78] sm:$0xff]
      %v547 = vld [vmem:[#allocation2 + $0x1] sm:$0xff]
      %v548 = vld [vmem:[#allocation2 + $0x9] sm:$0xff]
      %s549 = scalar_lea.vmem %s2, 128
      %v550 = vld [vmem:[%s549] sm:$0xff]
      %v551 = vld [vmem:[%s549 + $0x8] sm:$0xff]
      %v552 = vld [vmem:[%s549 + $0x10] sm:$0xff]
      %v553 = vld [vmem:[%s549 + $0x18] sm:$0xff]
      %v554 = vld [vmem:[%s549 + $0x20] sm:$0xff]
      %v555 = vld [vmem:[%s549 + $0x28] sm:$0xff]
      %v556 = vld [vmem:[%s549 + $0x30] sm:$0xff]
      %v557 = vld [vmem:[%s549 + $0x38] sm:$0xff]
      %v558 = vld [vmem:[%s549 + $0x40] sm:$0xff]
      %v559 = vld [vmem:[%s549 + $0x48] sm:$0xff]
      %v560 = vld [vmem:[%s549 + $0x50] sm:$0xff]
      %v561 = vld [vmem:[%s549 + $0x58] sm:$0xff]
      %v562 = vld [vmem:[%s549 + $0x60] sm:$0xff]
      %v563 = vld [vmem:[%s549 + $0x68] sm:$0xff]
      %v564 = vld [vmem:[%s549 + $0x70] sm:$0xff]
      %v565 = vld [vmem:[%s549 + $0x78] sm:$0xff]
      %566 = vmatprep.subr.mxu0 0.0
      %567 = vmatpush1.msra.mxu0 %v550
      %568 = vmatprep.subr.mxu0 0.0
      %569 = vmatpush1.msra.mxu0 %v551
      %570 = vmatprep.subr.mxu0 0.0
      %571 = vmatpush1.msra.mxu0 %v552
      %572 = vmatprep.subr.mxu0 0.0
      %573 = vmatpush1.msra.mxu0 %v553
      %574 = vmatprep.subr.mxu0 0.0
      %575 = vmatpush1.msra.mxu0 %v554
      %576 = vmatprep.subr.mxu0 0.0
      %577 = vmatpush1.msra.mxu0 %v555
      %578 = vmatprep.subr.mxu0 0.0
      %579 = vmatpush1.msra.mxu0 %v556
      %580 = vmatprep.subr.mxu0 0.0
      %581 = vmatpush1.msra.mxu0 %v557
      %582 = vmatprep.subr.mxu0 0.0
      %583 = vmatpush1.msra.mxu0 %v558
      %584 = vmatprep.subr.mxu0 0.0
      %585 = vmatpush1.msra.mxu0 %v559
      %586 = vmatprep.subr.mxu0 0.0
      %587 = vmatpush1.msra.mxu0 %v560
      %588 = vmatprep.subr.mxu0 0.0
      %589 = vmatpush1.msra.mxu0 %v561
      %590 = vmatprep.subr.mxu0 0.0
      %591 = vmatpush1.msra.mxu0 %v562
      %592 = vmatprep.subr.mxu0 0.0
      %593 = vmatpush1.msra.mxu0 %v563
      %594 = vmatprep.subr.mxu0 0.0
      %595 = vmatpush1.msra.mxu0 %v564
      %596 = vmatprep.subr.mxu0 0.0
      %597 = vmatpush1.msra.mxu0 %v565
      %598 = vmatprep.subr.mxu0 0.0
      %599 = vmatpush1.msra.mxu0 0.0
      %600 = vmatprep.subr.mxu0 0.0
      %601 = vmatpush1.msra.mxu0 0.0
      %602 = vmatprep.subr.mxu0 0.0
      %603 = vmatpush1.msra.mxu0 0.0
      %604 = vmatprep.subr.mxu0 0.0
      %605 = vmatpush1.msra.mxu0 0.0
      %606 = vmatprep.subr.mxu0 0.0
      %607 = vmatpush1.msra.mxu0 0.0
      %608 = vmatprep.subr.mxu0 0.0
      %609 = vmatpush1.msra.mxu0 0.0
      %610 = vmatprep.subr.mxu0 0.0
      %611 = vmatpush1.msra.mxu0 0.0
      %612 = vmatprep.subr.mxu0 0.0
      %613 = vmatpush1.msra.mxu0 0.0
      %614 = vmatprep.subr.mxu0 0.0
      %615 = vmatpush1.msra.mxu0 0.0
      %616 = vmatprep.subr.mxu0 0.0
      %617 = vmatpush1.msra.mxu0 0.0
      %618 = vmatprep.subr.mxu0 0.0
      %619 = vmatpush1.msra.mxu0 0.0
      %620 = vmatprep.subr.mxu0 0.0
      %621 = vmatpush1.msra.mxu0 0.0
      %622 = vmatprep.subr.mxu0 0.0
      %623 = vmatpush1.msra.mxu0 0.0
      %624 = vmatprep.subr.mxu0 0.0
      %625 = vmatpush1.msra.mxu0 0.0
      %626 = vmatprep.subr.mxu0 0.0
      %627 = vmatpush1.msra.mxu0 0.0
      %628 = vmatprep.subr.mxu0 0.0
      %629 = vmatpush1.msra.mxu0 0.0
      %630 = vmatprep.mubr.f32.mxu0 0.0
      %631 = vmatmul.mubr.f32.gmra.mrb[0].mxu0 %v547
      %v632 = vpop.f32.mrb[0].mxu0
      %v633 = vadd.f32 0.0, %v632
      %v634 = vpop.f32.mrb[0].mxu0
      %635 = vmatprep.mubr.f32.mxu0 0.0
      %636 = vmatmul.mubr.f32.gmra.mrb[0].mxu0 %v548
      %v637 = vpop.f32.mrb[0].mxu0
      %v638 = vadd.f32 0.0, %v637
      %v639 = vpop.f32.mrb[0].mxu0
      %640 = vdwg.mxu0
      %641 = vmatprep.subr.mxu0 0.0
      %642 = vmatpush1.msra.mxu0 %v531
      %643 = vmatprep.subr.mxu0 0.0
      %644 = vmatpush1.msra.mxu0 %v532
      %645 = vmatprep.subr.mxu0 0.0
      %646 = vmatpush1.msra.mxu0 %v533
      %647 = vmatprep.subr.mxu0 0.0
      %648 = vmatpush1.msra.mxu0 %v534
      %649 = vmatprep.subr.mxu0 0.0
      %650 = vmatpush1.msra.mxu0 %v535
      %651 = vmatprep.subr.mxu0 0.0
      %652 = vmatpush1.msra.mxu0 %v536
      %653 = vmatprep.subr.mxu0 0.0
      %654 = vmatpush1.msra.mxu0 %v537
      %655 = vmatprep.subr.mxu0 0.0
      %656 = vmatpush1.msra.mxu0 %v538
      %657 = vmatprep.subr.mxu0 0.0
      %658 = vmatpush1.msra.mxu0 %v539
      %659 = vmatprep.subr.mxu0 0.0
      %660 = vmatpush1.msra.mxu0 %v540
      %661 = vmatprep.subr.mxu0 0.0
      %662 = vmatpush1.msra.mxu0 %v541
      %663 = vmatprep.subr.mxu0 0.0
      %664 = vmatpush1.msra.mxu0 %v542
      %665 = vmatprep.subr.mxu0 0.0
      %666 = vmatpush1.msra.mxu0 %v543
      %667 = vmatprep.subr.mxu0 0.0
      %668 = vmatpush1.msra.mxu0 %v544
      %669 = vmatprep.subr.mxu0 0.0
      %670 = vmatpush1.msra.mxu0 %v545
      %671 = vmatprep.subr.mxu0 0.0
      %672 = vmatpush1.msra.mxu0 %v546
      %673 = vmatprep.subr.mxu0 0.0
      %674 = vmatpush1.msra.mxu0 0.0
      %675 = vmatprep.subr.mxu0 0.0
      %676 = vmatpush1.msra.mxu0 0.0
      %677 = vmatprep.subr.mxu0 0.0
      %678 = vmatpush1.msra.mxu0 0.0
      %679 = vmatprep.subr.mxu0 0.0
      %680 = vmatpush1.msra.mxu0 0.0
      %681 = vmatprep.subr.mxu0 0.0
      %682 = vmatpush1.msra.mxu0 0.0
      %683 = vmatprep.subr.mxu0 0.0
      %684 = vmatpush1.msra.mxu0 0.0
      %685 = vmatprep.subr.mxu0 0.0
      %686 = vmatpush1.msra.mxu0 0.0
      %687 = vmatprep.subr.mxu0 0.0
      %688 = vmatpush1.msra.mxu0 0.0
      %689 = vmatprep.subr.mxu0 0.0
      %690 = vmatpush1.msra.mxu0 0.0
      %691 = vmatprep.subr.mxu0 0.0
      %692 = vmatpush1.msra.mxu0 0.0
      %693 = vmatprep.subr.mxu0 0.0
      %694 = vmatpush1.msra.mxu0 0.0
      %695 = vmatprep.subr.mxu0 0.0
      %696 = vmatpush1.msra.mxu0 0.0
      %697 = vmatprep.subr.mxu0 0.0
      %698 = vmatpush1.msra.mxu0 0.0
      %699 = vmatprep.subr.mxu0 0.0
      %700 = vmatpush1.msra.mxu0 0.0
      %701 = vmatprep.subr.mxu0 0.0
      %702 = vmatpush1.msra.mxu0 0.0
      %703 = vmatprep.subr.mxu0 0.0
      %704 = vmatpush1.msra.mxu0 0.0
      %705 = vmatprep.mubr.f32.mxu0 0.0
      %706 = vmatmul.mubr.f32.gmra.mrb[0].mxu0 %v529
      %v707 = vpop.f32.mrb[0].mxu0
      %v708 = vadd.f32 %v633, %v707
      %v709 = vpop.f32.mrb[0].mxu0
      %710 = vmatprep.mubr.f32.mxu0 0.0
      %711 = vmatmul.mubr.f32.gmra.mrb[0].mxu0 %v530
      %v712 = vpop.f32.mrb[0].mxu0
      %v713 = vadd.f32 %v638, %v712
      %v714 = vpop.f32.mrb[0].mxu0
      %715 = vdwg.mxu0
      %v716 = vld [vmem:[#allocation2 + $0x2] sm:$0xff]
      %v717 = vld [vmem:[#allocation2 + $0xa] sm:$0xff]
      %s718 = scalar_lea.vmem %s2, 256
      %v719 = vld [vmem:[%s718] sm:$0xff]
      %v720 = vld [vmem:[%s718 + $0x8] sm:$0xff]
      %v721 = vld [vmem:[%s718 + $0x10] sm:$0xff]
      %v722 = vld [vmem:[%s718 + $0x18] sm:$0xff]
      %v723 = vld [vmem:[%s718 + $0x20] sm:$0xff]
      %v724 = vld [vmem:[%s718 + $0x28] sm:$0xff]
      %v725 = vld [vmem:[%s718 + $0x30] sm:$0xff]
      %v726 = vld [vmem:[%s718 + $0x38] sm:$0xff]
      %v727 = vld [vmem:[%s718 + $0x40] sm:$0xff]
      %v728 = vld [vmem:[%s718 + $0x48] sm:$0xff]
      %v729 = vld [vmem:[%s718 + $0x50] sm:$0xff]
      %v730 = vld [vmem:[%s718 + $0x58] sm:$0xff]
      %v731 = vld [vmem:[%s718 + $0x60] sm:$0xff]
      %v732 = vld [vmem:[%s718 + $0x68] sm:$0xff]
      %v733 = vld [vmem:[%s718 + $0x70] sm:$0xff]
      %v734 = vld [vmem:[%s718 + $0x78] sm:$0xff]
      %735 = vmatprep.subr.mxu0 0.0
      %736 = vmatpush1.msra.mxu0 %v719
      %737 = vmatprep.subr.mxu0 0.0
      %738 = vmatpush1.msra.mxu0 %v720
      %739 = vmatprep.subr.mxu0 0.0
      %740 = vmatpush1.msra.mxu0 %v721
      %741 = vmatprep.subr.mxu0 0.0
      %742 = vmatpush1.msra.mxu0 %v722
      %743 = vmatprep.subr.mxu0 0.0
      %744 = vmatpush1.msra.mxu0 %v723
      %745 = vmatprep.subr.mxu0 0.0
      %746 = vmatpush1.msra.mxu0 %v724
      %747 = vmatprep.subr.mxu0 0.0
      %748 = vmatpush1.msra.mxu0 %v725
      %749 = vmatprep.subr.mxu0 0.0
      %750 = vmatpush1.msra.mxu0 %v726
      %751 = vmatprep.subr.mxu0 0.0
      %752 = vmatpush1.msra.mxu0 %v727
      %753 = vmatprep.subr.mxu0 0.0
      %754 = vmatpush1.msra.mxu0 %v728
      %755 = vmatprep.subr.mxu0 0.0
      %756 = vmatpush1.msra.mxu0 %v729
      %757 = vmatprep.subr.mxu0 0.0
      %758 = vmatpush1.msra.mxu0 %v730
      %759 = vmatprep.subr.mxu0 0.0
      %760 = vmatpush1.msra.mxu0 %v731
      %761 = vmatprep.subr.mxu0 0.0
      %762 = vmatpush1.msra.mxu0 %v732
      %763 = vmatprep.subr.mxu0 0.0
      %764 = vmatpush1.msra.mxu0 %v733
      %765 = vmatprep.subr.mxu0 0.0
      %766 = vmatpush1.msra.mxu0 %v734
      %767 = vmatprep.subr.mxu0 0.0
      %768 = vmatpush1.msra.mxu0 0.0
      %769 = vmatprep.subr.mxu0 0.0
      %770 = vmatpush1.msra.mxu0 0.0
      %771 = vmatprep.subr.mxu0 0.0
      %772 = vmatpush1.msra.mxu0 0.0
      %773 = vmatprep.subr.mxu0 0.0
      %774 = vmatpush1.msra.mxu0 0.0
      %775 = vmatprep.subr.mxu0 0.0
      %776 = vmatpush1.msra.mxu0 0.0
      %777 = vmatprep.subr.mxu0 0.0
      %778 = vmatpush1.msra.mxu0 0.0
      %779 = vmatprep.subr.mxu0 0.0
      %780 = vmatpush1.msra.mxu0 0.0
      %781 = vmatprep.subr.mxu0 0.0
      %782 = vmatpush1.msra.mxu0 0.0
      %783 = vmatprep.subr.mxu0 0.0
      %784 = vmatpush1.msra.mxu0 0.0
      %785 = vmatprep.subr.mxu0 0.0
      %786 = vmatpush1.msra.mxu0 0.0
      %787 = vmatprep.subr.mxu0 0.0
      %788 = vmatpush1.msra.mxu0 0.0
      %789 = vmatprep.subr.mxu0 0.0
      %790 = vmatpush1.msra.mxu0 0.0
      %791 = vmatprep.subr.mxu0 0.0
      %792 = vmatpush1.msra.mxu0 0.0
      %793 = vmatprep.subr.mxu0 0.0
      %794 = vmatpush1.msra.mxu0 0.0
      %795 = vmatprep.subr.mxu0 0.0
      %796 = vmatpush1.msra.mxu0 0.0
      %797 = vmatprep.subr.mxu0 0.0
      %798 = vmatpush1.msra.mxu0 0.0
      %799 = vmatprep.mubr.f32.mxu0 0.0
      %800 = vmatmul.mubr.f32.gmra.mrb[0].mxu0 %v716
      %v801 = vpop.f32.mrb[0].mxu0
      %v802 = vadd.f32 0.0, %v801
      %v803 = vpop.f32.mrb[0].mxu0
      %804 = vmatprep.mubr.f32.mxu0 0.0
      %805 = vmatmul.mubr.f32.gmra.mrb[0].mxu0 %v717
      %v806 = vpop.f32.mrb[0].mxu0
      %v807 = vadd.f32 0.0, %v806
      %v808 = vpop.f32.mrb[0].mxu0
      %809 = vdwg.mxu0
      %v810 = vadd.f32 %v708, %v802
      %v811 = vadd.f32 %v713, %v807
      %v812 = vld [vmem:[%s4] sm:$0x1]
      %v814 = vlaneseq
      %v815 = vshrl.u32 %v814, 7
      %v816 = vsub.s32 0, %v815
      %v817 = vrot.slane %v812, %v816
      %v819 = vadd.f32 %v810, %v817
      %v820 = vadd.f32 %v811, %v817
      %v821 = vadd.f32 %v819, %v225
      %v822 = vadd.f32 %v820, %v226
      %823 = vst [vmem:[%s224] sm:$0xff] %v821
      %824 = vst [vmem:[%s224 + $0x8] sm:$0xff] %v822
      %p825 = scmp.lt.s32.totalorder %s16, 1
      %s826 = scalar_select %p825, %s16, 1
      %s827 = smul.addr %s826, 2
      %s828 = smul.addr %s827, 8
      %s829 = scalar_lea.vmem %s5, %s828
      // Predicated region
      $region41: #{residual_conv_unit.1} parent=39 // pred_check
        %p830 = pneg %p144
      $region42: #{residual_conv_unit.1} parent=39 // pred_check_branch
        %832 = sbr.rel (%p830) target = $region44
      $region43: #{residual_conv_unit.1} parent=39 // pred_region
        _
      $region44: #{residual_conv_unit.1} parent=39 // pred_fallthru
        _
    $region40: #{residual_conv_unit.1} parent=5 // pred_fallthru
      _
    %p833 = scmp.le.s32.totalorder 2, %s11
    // Predicated region
    $region45: #{residual_conv_unit.1} parent=5 // pred_check
      %p834 = pneg %p833
    $region46: #{residual_conv_unit.1} parent=5 // pred_check_branch
      %836 = sbr.rel (%p834) target = $region48
    $region47: #{residual_conv_unit.1} parent=5 // pred_region
      %s837 = ssub.s32 %s11, 2
      // Predicated region
      $region49: #{residual_conv_unit.1} parent=47 // pred_check
        %p838 = pneg %p150
      $region50: #{residual_conv_unit.1} parent=47 // pred_check_branch
        %840 = sbr.rel (%p838) target = $region52
      $region51: #{residual_conv_unit.1} parent=47 // pred_region
        %p841 = scmp.lt.s32.totalorder %s17, 1
        %s842 = scalar_select %p841, %s17, 1
        %s843 = smul.addr %s842, 2
        %s844 = smul.addr %s843, 8
        %s845 = scalar_lea.vmem %s5, %s844
      $region52: #{residual_conv_unit.1} parent=47 // pred_fallthru
        _
    $region48: #{residual_conv_unit.1} parent=5 // pred_fallthru
      _
  $region6: #{residual_conv_unit.1} parent=0 // loop_footer
    %s15 = sadd.s32 1, %s11
  $region7: #{residual_conv_unit.1} parent=0 // loop_footer_branch
    %10 = sbr.rel target = $region3
  $region8: #{residual_conv_unit.1} parent=0 // loop_exit
    _

</llo_original>
